<compile_context>
chip_gen: v7x
topology: tpu7x:2x2x1
jax: 0.10.0
libtpu: 0.0.40
codegen_flags: <defaults>
</compile_context>

<pallas_src>
import functools

import numpy as np
import jax
import jax.numpy as jnp
from jax.experimental import pallas as pl
from jax.experimental.pallas import tpu as pltpu


# ------------------------------------------------------------------ constants

_AMIN2 = 1e-40                                     # (librosa amin=1e-20)^2, dB from power
_TOP_DB = 80.0
_DB_FROM_LN_POWER = float(10.0 / np.log(10.0))     # db = C * ln(power)
_LN_FROM_DB = float(np.log(10.0) / 20.0)           # amp = exp(db * C)
_VMEM_LIMIT = 48 * 1024 * 1024                     # < v7x 64 MiB/TC physical
_MAX_TILE = 256                                    # frames per tile


def _round_up(x, m):
    return ((x + m - 1) // m) * m


# ------------------------------------------------------------------ parameters

def _smoothing_vectors(n_grad_freq, n_grad_time):
    """Separable factors of the noisereduce smoothing filter (outer(vf, vt)/sum)."""
    vf = np.concatenate([np.linspace(0.0, 1.0, n_grad_freq + 1, endpoint=False),
                         np.linspace(1.0, 0.0, n_grad_freq + 2)])[1:-1]
    vt = np.concatenate([np.linspace(0.0, 1.0, n_grad_time + 1, endpoint=False),
                         np.linspace(1.0, 0.0, n_grad_time + 2)])[1:-1]
    return (tuple(float(v) for v in (vf / vf.sum())),
            tuple(float(v) for v in (vt / vt.sum())))


def _hann_window(win_length):
    """Periodic Hann window (torch.hann_window default)."""
    return (0.5 - 0.5 * np.cos(2.0 * np.pi * np.arange(win_length) / win_length)
            ).astype(np.float32)


def _stft_basis(n_fft, win_length, window, f_pad):
    """Fused windowed real-DFT basis [cos | sin], K = win_length rows only
    (rows outside the centered window are zero and would waste MXU cycles).
    frames @ basis[:, :f_pad] = Re(stft), frames @ basis[:, f_pad:] = Im(stft)."""
    f_bins = n_fft // 2 + 1
    pad_l = (n_fft - win_length) // 2
    n = (pad_l + np.arange(win_length, dtype=np.float64))[:, None]
    k = np.arange(f_bins, dtype=np.float64)[None, :]
    ang = 2.0 * np.pi * n * k / n_fft
    basis = np.zeros((win_length, 2 * f_pad), np.float32)
    basis[:, :f_bins] = window[:, None] * np.cos(ang)
    basis[:, f_pad:f_pad + f_bins] = -(window[:, None] * np.sin(ang))
    return basis


# -------------------------------------------------------------- Pallas kernels

def _stft_kernel(frames_ref, basis_ref, re_ref, im_ref, pmax_ref, pmin_ref, *,
                 f_pad, halo, n_frames, t_tile):
    """Windowed DFT of one frame tile (bf16 x bf16 -> f32 on the MXU) plus the
    per-tile max/min power partials over the valid (real-frame) rows, so no
    separate full-spectrogram reduction pass is needed afterwards."""
    i = pl.program_id(0)
    res = jnp.dot(frames_ref[...], basis_ref[...],
                  preferred_element_type=jnp.float32)          # (tt, 2*f_pad)
    re = res[:, :f_pad].astype(jnp.bfloat16)
    im = res[:, f_pad:].astype(jnp.bfloat16)
    re_ref[...] = re
    im_ref[...] = im
    re32 = re.astype(jnp.float32)
    im32 = im.astype(jnp.float32)
    power = re32 * re32 + im32 * im32
    row = jax.lax.broadcasted_iota(jnp.int32, power.shape, 0) + i * t_tile
    valid = (row >= halo) & (row < halo + n_frames)
    pmax = jnp.max(jnp.where(valid, power, -jnp.inf), axis=0, keepdims=True)
    pmin = jnp.min(jnp.where(valid, power, jnp.inf), axis=0, keepdims=True)
    pmax_ref[...] = pmax[None]
    pmin_ref[...] = pmin[None]


def _noise_thresh_kernel(scal_ref, re_ref, im_ref, thresh_ref, s1_ref, s2_ref, *,
                         halo, n_frames, t_tile, n_std_thresh, ddof):
    """Time-tiled per-frequency threshold: running (shifted) sum / sum-of-squares
    accumulators in VMEM scratch, finalized on the last tile."""
    i = pl.program_id(0)

    @pl.when(i == 0)
    def _():
        s1_ref[...] = jnp.zeros_like(s1_ref)
        s2_ref[...] = jnp.zeros_like(s2_ref)

    clamp_floor = scal_ref[0]                      # max_noise_db - top_db
    re = re_ref[...].astype(jnp.float32)
    im = im_ref[...].astype(jnp.float32)
    power = re * re + im * im
    db = _DB_FROM_LN_POWER * jnp.log(jnp.maximum(power, _AMIN2))
    db = jnp.maximum(db, clamp_floor)
    row = jax.lax.broadcasted_iota(jnp.int32, db.shape, 0) + i * t_tile
    valid = (row >= halo) & (row < halo + n_frames)
    d = jnp.where(valid, db - clamp_floor, 0.0)    # shift -> accurate f32 sums
    s1_ref[...] += jnp.sum(d, axis=0, keepdims=True)
    s2_ref[...] += jnp.sum(d * d, axis=0, keepdims=True)

    @pl.when(i == pl.num_programs(0) - 1)
    def _():
        n = float(n_frames)
        mean = s1_ref[...] / n
        var = jnp.maximum(s2_ref[...] / n - mean * mean, 0.0)
        # NOTE: unbiased std (torch.std default); np.std in numpy noisereduce is ddof=0.
        var = var * (n / max(n - ddof, 1.0))
        thresh_ref[...] = (clamp_floor + mean) + jnp.sqrt(var) * n_std_thresh


def _gate_kernel(scal_ref, thresh_ref, wt_ref, re_hbm, im_hbm,
                 out_re_ref, out_im_ref, re_buf, im_buf, sems, *,
                 f_bins, n_frames, t_tile, halo, gf, wf, prop_decrease):
    """Fused amp->dB + spectral mask + separable smoothing + spectral gate.

    The time halo (+-halo rows, zero frames at both audio ends) is fetched by a
    manually double-buffered DMA of the overlapping (t_tile + 2*halo, f_pad)
    window straight from HBM -> no XLA-side halo gather / extra HBM pass.
    Requires a sequential ("arbitrary") grid."""
    j = pl.program_id(0)
    nj = pl.num_programs(0)
    th = t_tile + 2 * halo

    def start_copies(tile_idx, slot):
        pltpu.make_async_copy(re_hbm.at[pl.ds(tile_idx * t_tile, th)],
                              re_buf.at[slot], sems.at[slot, 0]).start()
        pltpu.make_async_copy(im_hbm.at[pl.ds(tile_idx * t_tile, th)],
                              im_buf.at[slot], sems.at[slot, 1]).start()

    slot = jax.lax.rem(j, 2)

    @pl.when(j == 0)
    def _():
        start_copies(0, 0)                          # prime slot 0

    @pl.when(j + 1 < nj)
    def _():
        start_copies(j + 1, 1 - slot)               # prefetch next tile

    pltpu.make_async_copy(re_hbm.at[pl.ds(j * t_tile, th)],
                          re_buf.at[slot], sems.at[slot, 0]).wait()
    pltpu.make_async_copy(im_hbm.at[pl.ds(j * t_tile, th)],
                          im_buf.at[slot], sems.at[slot, 1]).wait()

    clamp_floor = scal_ref[0]                       # max_sig_db - top_db
    mask_gain_db = scal_ref[1]                      # min of clamped sig dB spec
    thresh = thresh_ref[...]                        # (1, f_pad)

    re = re_buf[slot].astype(jnp.float32)           # (th, f_pad)
    im = im_buf[slot].astype(jnp.float32)
    th_, f_pad_ = re.shape

    power = re * re + im * im
    db = _DB_FROM_LN_POWER * jnp.log(jnp.maximum(power, _AMIN2))
    db = jnp.maximum(db, clamp_floor)
    mask = (db < thresh).astype(jnp.float32)

    # Zero the mask outside the real (time, freq) region so the smoothing sees
    # exactly the zero padding of the reference "same" conv2d.
    row = jax.lax.broadcasted_iota(jnp.int32, (th_, f_pad_), 0) + j * t_tile
    col = jax.lax.broadcasted_iota(jnp.int32, (th_, f_pad_), 1)
    valid = (row >= halo) & (row < halo + n_frames) & (col < f_bins)
    mask = jnp.where(valid, mask, 0.0)

    # Freq pass of the separable smoothing: (2*gf+1) taps as lane rolls (XLU).
    sm = float(wf[gf]) * mask
    for p in range(2 * gf + 1):
        if p == gf:
            continue
        shift = (gf - p) % f_pad_
        sm = sm + float(wf[p]) * pltpu.roll(mask, shift, 1)

    # Time pass as a small banded matmul on the otherwise-idle MXU:
    # smoothed[r] = sum_q wt[q] * sm[r + halo - gt + q].
    smoothed = jnp.dot(wt_ref[...], sm.astype(jnp.bfloat16),
                       preferred_element_type=jnp.float32)     # (t_tile, f_pad)
    smoothed = smoothed * prop_decrease

    re_c = re[halo:halo + t_tile, :]
    im_c = im[halo:halo + t_tile, :]
    db_c = db[halo:halo + t_tile, :]
    keep = 1.0 - smoothed
    db_masked = db_c * keep + mask_gain_db * smoothed
    amp = jnp.exp(db_masked * _LN_FROM_DB)
    # NOTE: np.sign-of-real-part convention of noisereduce-v1; sign(0) == 0.
    out_re_ref[...] = amp * jnp.sign(re_c)
    out_im_ref[...] = im_c * keep


# -------------------------------------------------------------------- module

class NoiseReduceModule:
    """JAX/Pallas port of the PyTorch NoiseReduceModule forward pass."""

    def __init__(self, n_fft=2048, win_length=2048, hop_length=512, n_grad_freq=2,
                 n_grad_time=4, n_std_thres=1.5, prop_descrease=1.0, pad_clipping=True):
        self.n_fft = n_fft
        self.win_length = win_length
        self.hop_length = hop_length
        self.n_grad_freq = n_grad_freq
        self.n_grad_time = n_grad_time
        self.n_std_thres = n_std_thres
        self.prop_decrease = prop_descrease
        self.pad_clipping = pad_clipping

        self.f_bins = n_fft // 2 + 1
        f_pad = _round_up(self.f_bins, 128)
        # need >= n_grad_freq zero lanes so the roll-based "same" freq conv is exact
        if f_pad - self.f_bins < n_grad_freq:
            f_pad += 128
        self.f_pad = f_pad
        # time halo rows (multiple of 8 so every DMA slice stays (8,128)-aligned)
        self.halo = max(8, _round_up(n_grad_time, 8))

        self._wf, self._wt = _smoothing_vectors(n_grad_freq, n_grad_time)
        self._pad_l = (n_fft - win_length) // 2
        win_np = _hann_window(win_length)
        # full-length (n_fft) window for the istft overlap-add normalization
        self._win_full_np = np.pad(win_np,
                                   (self._pad_l, n_fft - win_length - self._pad_l))
        # fused [cos | sin] bf16 basis: half the VMEM residency, one MXU stream.
        self._basis = jnp.asarray(_stft_basis(n_fft, win_length, win_np, f_pad),
                                  jnp.bfloat16)

    # ----------------------------------------------------------------- tiling

    def _tile(self, n_frames):
        tt = min(_MAX_TILE, max(_round_up(n_frames, 16), 2 * self.halo))
        num_out = -(-n_frames // tt)
        return tt, num_out

    # ------------------------------------------------------------------ stages

    def _stft(self, x):
        n_fft, hop, f_pad = self.n_fft, self.hop_length, self.f_pad
        k_len, halo = self.win_length, self.halo
        # torch.stft(center=True) reflect framing; requires len(x) > n_fft//2
        x = jnp.pad(x, (n_fft // 2, n_fft // 2), mode="reflect")
        n_frames = 1 + (x.shape[0] - n_fft) // hop
        tt, num_out = self._tile(n_frames)
        t_out_pad = num_out * tt
        t_stft_pad = t_out_pad + tt            # room for the +-halo zero-frame rows
        num_tiles = t_stft_pad // tt

        # TODO(synk): the hop-strided framing gather stays in XLA (bf16 halves its
        # HBM traffic); moving it in-kernel needs a manual pl.ANY + DMA path.
        idx = (np.arange(n_frames)[:, None] * hop + self._pad_l
               + np.arange(k_len)[None, :])
        frames = x[idx].astype(jnp.bfloat16)
        # zero frames before/after the real ones -> zero-spectrum halo rows
        frames = jnp.pad(frames, ((halo, t_stft_pad - n_frames - halo), (0, 0)))

        kern = functools.partial(_stft_kernel, f_pad=f_pad, halo=halo,
                                 n_frames=n_frames, t_tile=tt)
        cost = pl.CostEstimate(
            flops=int(2 * t_stft_pad * k_len * 2 * f_pad),
            transcendentals=0,
            bytes_accessed=int(t_stft_pad * k_len * 2 + k_len * 2 * f_pad * 2
                               + 2 * t_stft_pad * f_pad * 2))
        re, im, pmax, pmin = pl.pallas_call(
            kern,
            grid=(num_tiles,),
            in_specs=[pl.BlockSpec((tt, k_len), lambda i: (i, 0)),
                      # constant index_map -> basis stays VMEM-resident (the default
                      # second pipeline buffer is wasted space but fits all gens).
                      pl.BlockSpec((k_len, 2 * f_pad), lambda i: (0, 0))],
            out_specs=[pl.BlockSpec((tt, f_pad), lambda i: (i, 0)),
                       pl.BlockSpec((tt, f_pad), lambda i: (i, 0)),
                       pl.BlockSpec((1, 1, f_pad), lambda i: (i, 0, 0)),
                       pl.BlockSpec((1, 1, f_pad), lambda i: (i, 0, 0))],
            out_shape=[jax.ShapeDtypeStruct((t_stft_pad, f_pad), jnp.bfloat16),
                       jax.ShapeDtypeStruct((t_stft_pad, f_pad), jnp.bfloat16),
                       jax.ShapeDtypeStruct((num_tiles, 1, f_pad), jnp.float32),
                       jax.ShapeDtypeStruct((num_tiles, 1, f_pad), jnp.float32)],
            compiler_params=pltpu.CompilerParams(
                dimension_semantics=("parallel",),
                vmem_limit_bytes=_VMEM_LIMIT),
            cost_estimate=cost,
        )(frames, self._basis)
        return re, im, pmax, pmin, n_frames, tt

    def _noise_threshold(self, n_re, n_im, n_pmax, t_noise, tt):
        f_pad, f_bins = self.f_pad, self.f_bins
        num_tiles = n_re.shape[0] // tt
        # global top_db reference over the real (T, F) region (from STFT partials)
        max_pow = jnp.max(n_pmax[:, 0, :f_bins])
        clamp_floor = (_DB_FROM_LN_POWER * jnp.log(jnp.maximum(max_pow, _AMIN2))
                       - _TOP_DB)
        scal = clamp_floor.reshape(1).astype(jnp.float32)
        kern = functools.partial(_noise_thresh_kernel, halo=self.halo,
                                 n_frames=t_noise, t_tile=tt,
                                 n_std_thresh=float(self.n_std_thres), ddof=1)
        return pl.pallas_call(
            kern,
            grid=(num_tiles,),
            in_specs=[pl.BlockSpec(memory_space=pltpu.MemorySpace.SMEM),
                      pl.BlockSpec((tt, f_pad), lambda i: (i, 0)),
                      pl.BlockSpec((tt, f_pad), lambda i: (i, 0))],
            out_specs=pl.BlockSpec((1, f_pad), lambda i: (0, 0)),
            out_shape=jax.ShapeDtypeStruct((1, f_pad), jnp.float32),
            scratch_shapes=[pltpu.VMEM((1, f_pad), jnp.float32),
                            pltpu.VMEM((1, f_pad), jnp.float32)],
            compiler_params=pltpu.CompilerParams(
                dimension_semantics=("arbitrary",),
                vmem_limit_bytes=_VMEM_LIMIT),
        )(scal, n_re, n_im)

    def _gate(self, re, im, thresh, pmax, pmin, n_frames, tt):
        gf, gt, halo = self.n_grad_freq, self.n_grad_time, self.halo
        f_pad, f_bins = self.f_pad, self.f_bins
        num_tiles = re.shape[0] // tt - 1
        t_out_pad = num_tiles * tt
        th = tt + 2 * halo

        # Global scalars from the STFT partial reductions (no spectrogram re-read).
        max_pow = jnp.max(pmax[:, 0, :f_bins])
        min_pow = jnp.min(pmin[:, 0, :f_bins])
        clamp_floor = (_DB_FROM_LN_POWER * jnp.log(jnp.maximum(max_pow, _AMIN2))
                       - _TOP_DB)
        mask_gain_db = jnp.maximum(
            _DB_FROM_LN_POWER * jnp.log(jnp.maximum(min_pow, _AMIN2)), clamp_floor)
        scal = jnp.stack([clamp_floor, mask_gain_db]).astype(jnp.float32)

        # Banded time-smoothing matrix (MXU): Wt[r, r + halo - gt + q] = wt[q].
        wt = np.asarray(self._wt, np.float32)
        wt_mat = np.zeros((tt, th), np.float32)
        rows = np.arange(tt)
        for q in range(2 * gt + 1):
            wt_mat[rows, rows + halo - gt + q] = wt[q]
        wt_mat = jnp.asarray(wt_mat, jnp.bfloat16)

        kern = functools.partial(
            _gate_kernel, f_bins=f_bins, n_frames=n_frames, t_tile=tt, halo=halo,
            gf=gf, wf=self._wf, prop_decrease=float(self.prop_decrease))
        cost = pl.CostEstimate(
            flops=int(num_tiles * (2 * tt * th * f_pad
                                   + th * f_pad * (12 + 2 * (2 * gf + 1)))),
            transcendentals=int(num_tiles * (th + tt) * f_pad),
            bytes_accessed=int(2 * (num_tiles * th * f_pad * 2
                                    + t_out_pad * f_pad * 4)))
        out_re, out_im = pl.pallas_call(
            kern,
            grid=(num_tiles,),
            in_specs=[pl.BlockSpec(memory_space=pltpu.MemorySpace.SMEM),
                      pl.BlockSpec((1, f_pad), lambda j: (0, 0)),      # resident
                      pl.BlockSpec((tt, th), lambda j: (0, 0)),        # resident
                      pl.BlockSpec(memory_space=pl.ANY),               # re (HBM)
                      pl.BlockSpec(memory_space=pl.ANY)],              # im (HBM)
            out_specs=[pl.BlockSpec((tt, f_pad), lambda j: (j, 0)),
                       pl.BlockSpec((tt, f_pad), lambda j: (j, 0))],
            out_shape=[jax.ShapeDtypeStruct((t_out_pad, f_pad), jnp.float32),
                       jax.ShapeDtypeStruct((t_out_pad, f_pad), jnp.float32)],
            scratch_shapes=[pltpu.VMEM((2, th, f_pad), jnp.bfloat16),
                            pltpu.VMEM((2, th, f_pad), jnp.bfloat16),
                            pltpu.SemaphoreType.DMA((2, 2))],
            compiler_params=pltpu.CompilerParams(
                # sequential: the manual cross-iteration double-buffer DMA
                # requires every tile to run on the same core in order.
                dimension_semantics=("arbitrary",),
                vmem_limit_bytes=_VMEM_LIMIT),
            cost_estimate=cost,
        )(scal, thresh, wt_mat, re, im)
        return out_re, out_im

    def _istft(self, re, im):
        # TODO(synk): inverse FFT + overlap-add has no clean Pallas equivalent on
        # TPU; done in plain JAX (torch.istft semantics).
        n_fft, hop = self.n_fft, self.hop_length
        window = self._win_full_np
        frames = jnp.fft.irfft(re + 1j * im, n=n_fft, axis=1) * window[None, :]
        t_frames = frames.shape[0]
        out_len = n_fft + hop * (t_frames - 1)
        if n_fft % hop == 0:
            # overlap-add as n_fft/hop non-overlapping strided adds (no scatter)
            r = n_fft // hop
            chunks = frames.reshape(t_frames, r, hop)
            sig2d = jnp.zeros((t_frames + r - 1, hop), jnp.float32)
            for q in range(r):
                sig2d = sig2d.at[q:q + t_frames].add(chunks[:, q, :])
            sig = sig2d.reshape(-1)
            wss2d = np.zeros((t_frames + r - 1, hop), np.float32)
            w2 = (window.astype(np.float64) ** 2).reshape(r, hop)
            for q in range(r):
                wss2d[q:q + t_frames] += w2[q]
            wss = wss2d.reshape(-1)
        else:
            idx = (np.arange(t_frames)[:, None] * hop
                   + np.arange(n_fft)[None, :]).reshape(-1)
            sig = jnp.zeros((out_len,), jnp.float32).at[idx].add(frames.reshape(-1))
            wss = np.zeros((out_len,), np.float64)
            np.add.at(wss, idx, np.tile(window.astype(np.float64) ** 2, t_frames))
        denom = np.where(wss > 1e-10, wss, 1.0).astype(np.float32)
        sig = sig / jnp.asarray(denom)
        return sig[n_fft // 2: n_fft // 2 + (out_len - n_fft)]   # undo center pad

    # ---------------------------------------------------------------- forward

    def __call__(self, audio_clip, sr, noise_clip=None):
        if noise_clip is None:
            # NOTE: for very short clips / low sr this slice can be shorter than
            # n_fft//2 and the reflect pad (torch.stft semantics) would fail.
            noise_clip = audio_clip[..., : int(sr * 0.5)]
        # --- noise spectrogram -> per-frequency threshold
        n_re, n_im, n_pmax, _n_pmin, t_noise, tt_n = self._stft(noise_clip)
        thresh = self._noise_threshold(n_re, n_im, n_pmax, t_noise, tt_n)
        # --- signal spectrogram
        nsamp = audio_clip.shape[-1]
        audio = audio_clip
        if self.pad_clipping:
            audio = jnp.pad(audio, (0, self.hop_length))
        s_re, s_im, s_pmax, s_pmin, t_sig, tt_s = self._stft(audio)
        # --- fused dB + mask + separable smoothing + spectral gate
        out_re, out_im = self._gate(s_re, s_im, thresh, s_pmax, s_pmin, t_sig, tt_s)
        # --- back to time domain (drop freq/time padding first)
        recovered = self._istft(out_re[:t_sig, :self.f_bins],
                                out_im[:t_sig, :self.f_bins])
        if self.pad_clipping:
            recovered = recovered[..., :nsamp]
        return recovered


if __name__ == "__main__":
    sr = 256
    n_samples = 512
    module = NoiseReduceModule(n_fft=64, win_length=64, hop_length=16,
                               n_grad_freq=2, n_grad_time=4,
                               n_std_thres=1.5, prop_descrease=1.0,
                               pad_clipping=True)

    key = jax.random.PRNGKey(0)
    t = jnp.arange(n_samples, dtype=jnp.float32) / sr
    audio = (jnp.sin(2.0 * jnp.pi * 40.0 * t)
             + 0.3 * jax.random.normal(key, (n_samples,), dtype=jnp.float32))

    out = module(audio, sr)                 # noise_clip defaults to first 0.5 s
    out = jax.block_until_ready(out)
    assert out.shape == (n_samples,), out.shape
    assert bool(jnp.all(jnp.isfinite(out)))
    print("KERNEL_OK")
</pallas_src>

<mosaic_0001>
module attributes {stable_mosaic.version = 11 : i64} {
  func.func @_stft_kernel(%arg0: i32, %arg1: memref<16x64xbf16, #tpu.memory_space<vmem>>, %arg2: memref<64x256xbf16, #tpu.memory_space<vmem>>, %arg3: memref<16x128xbf16, #tpu.memory_space<vmem>>, %arg4: memref<16x128xbf16, #tpu.memory_space<vmem>>, %arg5: memref<1x1x128xf32, #tpu.memory_space<vmem>>, %arg6: memref<1x1x128xf32, #tpu.memory_space<vmem>>) attributes {dimension_semantics = [#tpu.dimension_semantics<parallel>], iteration_bounds = array<i64: 2>, scalar_prefetch = 0 : i64, scratch_operands = 0 : i64, tpu.core_type = #tpu.core_type<tc>, window_params = [{transform_indices = @transform_0, window_bounds = array<i64: 16, 64>}, {pipeline_mode = #tpu.pipeline_mode<synchronous>, transform_indices = @transform_1, window_bounds = array<i64: 64, 256>}, {transform_indices = @transform_2, window_bounds = array<i64: 16, 128>}, {transform_indices = @transform_3, window_bounds = array<i64: 16, 128>}, {transform_indices = @transform_4, window_bounds = array<i64: 1, 1, 128>}, {transform_indices = @transform_5, window_bounds = array<i64: 1, 1, 128>}]} {
    %c0 = arith.constant 0 : index
    %c0_0 = arith.constant 0 : index
    %0 = vector.load %arg1[%c0, %c0_0] : memref<16x64xbf16, #tpu.memory_space<vmem>>, vector<16x64xbf16>
    %c0_1 = arith.constant 0 : index
    %c0_2 = arith.constant 0 : index
    %1 = vector.load %arg2[%c0_1, %c0_2] : memref<64x256xbf16, #tpu.memory_space<vmem>>, vector<64x256xbf16>
    %cst = arith.constant dense<0.000000e+00> : vector<16x256xf32>
    %2 = tpu.matmul %0, %1, %cst {dimension_numbers = #tpu.dot_dimension_numbers<[1], [0], [0], [1], [0, 0, 1, 1], [], []>} : vector<16x64xbf16>, vector<64x256xbf16>, vector<16x256xf32> -> vector<16x256xf32>
    %3 = vector.extract_strided_slice %2 {offsets = [0, 0], sizes = [16, 128], strides = [1, 1]} : vector<16x256xf32> to vector<16x128xf32>
    %4 = arith.truncf %3 : vector<16x128xf32> to vector<16x128xbf16>
    %5 = vector.extract_strided_slice %2 {offsets = [0, 128], sizes = [16, 128], strides = [1, 1]} : vector<16x256xf32> to vector<16x128xf32>
    %6 = arith.truncf %5 : vector<16x128xf32> to vector<16x128xbf16>
    %c0_3 = arith.constant 0 : index
    %c0_4 = arith.constant 0 : index
    %7 = vector.load %arg3[%c0_3, %c0_4] : memref<16x128xbf16, #tpu.memory_space<vmem>>, vector<16x128xbf16>
    tpu.vector_store %arg3[%c0_3, %c0_4], %4 {strides = array<i32>} : memref<16x128xbf16, #tpu.memory_space<vmem>>, vector<16x128xbf16>,
    %c0_5 = arith.constant 0 : index
    %c0_6 = arith.constant 0 : index
    %8 = vector.load %arg4[%c0_5, %c0_6] : memref<16x128xbf16, #tpu.memory_space<vmem>>, vector<16x128xbf16>
    tpu.vector_store %arg4[%c0_5, %c0_6], %6 {strides = array<i32>} : memref<16x128xbf16, #tpu.memory_space<vmem>>, vector<16x128xbf16>,
    %9 = arith.extf %4 : vector<16x128xbf16> to vector<16x128xf32>
    %10 = arith.extf %6 : vector<16x128xbf16> to vector<16x128xf32>
    %11 = arith.mulf %9, %9 : vector<16x128xf32>
    %12 = arith.mulf %10, %10 : vector<16x128xf32>
    %13 = arith.addf %11, %12 : vector<16x128xf32>
    %14 = tpu.iota {dimensions = array<i32: 0>} : vector<16x128xi32>
    %c16_i32 = arith.constant 16 : i32
    %15 = arith.muli %arg0, %c16_i32 : i32
    %16 = vector.broadcast %15 : i32 to vector<16x128xi32>
    %17 = arith.addi %14, %16 : vector<16x128xi32>
    %c8_i32 = arith.constant 8 : i32
    %18 = vector.broadcast %c8_i32 : i32 to vector<16x128xi32>
    %19 = arith.cmpi sge, %17, %18 : vector<16x128xi32>
    %c17_i32 = arith.constant 17 : i32
    %20 = vector.broadcast %c17_i32 : i32 to vector<16x128xi32>
    %21 = arith.cmpi slt, %17, %20 : vector<16x128xi32>
    %22 = arith.andi %19, %21 : vector<16x128xi1>
    %cst_7 = arith.constant 0xFF800000 : f32
    %23 = vector.broadcast %cst_7 : f32 to vector<16x128xf32>
    %24 = arith.select %22, %13, %23 : vector<16x128xi1>, vector<16x128xf32>
    %cst_8 = arith.constant dense<0xFF800000> : vector<128xf32>
    %25 = vector.multi_reduction <maximumf>, %24, %cst_8 [0] : vector<16x128xf32> to vector<128xf32>
    %26 = vector.shape_cast %25 : vector<128xf32> to vector<1x128xf32>
    %cst_9 = arith.constant 0x7F800000 : f32
    %27 = vector.broadcast %cst_9 : f32 to vector<16x128xf32>
    %28 = arith.select %22, %13, %27 : vector<16x128xi1>, vector<16x128xf32>
    %cst_10 = arith.constant dense<0x7F800000> : vector<128xf32>
    %29 = vector.multi_reduction <minimumf>, %28, %cst_10 [0] : vector<16x128xf32> to vector<128xf32>
    %30 = vector.shape_cast %29 : vector<128xf32> to vector<1x128xf32>
    %31 = vector.shape_cast %26 : vector<1x128xf32> to vector<1x1x128xf32>
    %c0_11 = arith.constant 0 : index
    %c0_12 = arith.constant 0 : index
    %c0_13 = arith.constant 0 : index
    %32 = vector.load %arg5[%c0_11, %c0_12, %c0_13] : memref<1x1x128xf32, #tpu.memory_space<vmem>>, vector<1x1x128xf32>
    tpu.vector_store %arg5[%c0_11, %c0_12, %c0_13], %31 {strides = array<i32>} : memref<1x1x128xf32, #tpu.memory_space<vmem>>, vector<1x1x128xf32>,
    %33 = vector.shape_cast %30 : vector<1x128xf32> to vector<1x1x128xf32>
    %c0_14 = arith.constant 0 : index
    %c0_15 = arith.constant 0 : index
    %c0_16 = arith.constant 0 : index
    %34 = vector.load %arg6[%c0_14, %c0_15, %c0_16] : memref<1x1x128xf32, #tpu.memory_space<vmem>>, vector<1x1x128xf32>
    tpu.vector_store %arg6[%c0_14, %c0_15, %c0_16], %33 {strides = array<i32>} : memref<1x1x128xf32, #tpu.memory_space<vmem>>, vector<1x1x128xf32>,
    return
  }
  func.func @transform_0(%arg0: i32) -> (i32, i32) {
    %c0_i32 = arith.constant 0 : i32
    %c0_i32_0 = arith.constant 0 : i32
    return %arg0, %c0_i32 : i32, i32
  }
  func.func @transform_1(%arg0: i32) -> (i32, i32) {
    %c0_i32 = arith.constant 0 : i32
    %c0_i32_0 = arith.constant 0 : i32
    %c0_i32_1 = arith.constant 0 : i32
    return %c0_i32, %c0_i32_0 : i32, i32
  }
  func.func @transform_2(%arg0: i32) -> (i32, i32) {
    %c0_i32 = arith.constant 0 : i32
    %c0_i32_0 = arith.constant 0 : i32
    return %arg0, %c0_i32 : i32, i32
  }
  func.func @transform_3(%arg0: i32) -> (i32, i32) {
    %c0_i32 = arith.constant 0 : i32
    %c0_i32_0 = arith.constant 0 : i32
    return %arg0, %c0_i32 : i32, i32
  }
  func.func @transform_4(%arg0: i32) -> (i32, i32, i32) {
    %c0_i32 = arith.constant 0 : i32
    %c0_i32_0 = arith.constant 0 : i32
    %c0_i32_1 = arith.constant 0 : i32
    return %arg0, %c0_i32, %c0_i32_0 : i32, i32, i32
  }
  func.func @transform_5(%arg0: i32) -> (i32, i32, i32) {
    %c0_i32 = arith.constant 0 : i32
    %c0_i32_0 = arith.constant 0 : i32
    %c0_i32_1 = arith.constant 0 : i32
    return %arg0, %c0_i32, %c0_i32_0 : i32, i32, i32
  }
}

</mosaic_0001>

<llo_original>
// kernel: tpu_custom_call.1
$region0: #{tpu_custom_call.1}
  #allocation0 [shape = 'u32[]', space=smem, size = 0x4, offset = 0x4, fixed_abs, tag = 'smem constant byte address 0x4 - core index']
  #allocation1 [shape = 'u32[144,128]{1,0:T(1,128)}', space=vmem, size = 0x12000, scoped, tag = 'internal scratch']
  %s0 = inlined_call_operand.hbm [shape: bf16[32,64], index: 0, kind: input, shape index: {}]
  %s1 = inlined_call_operand.hbm [shape: bf16[64,256], index: 1, kind: input, shape index: {}]
  %s2 = inlined_call_operand.hbm [shape: bf16[32,128], index: 2, kind: output, shape index: {0}]
  %s3 = inlined_call_operand.hbm [shape: bf16[32,128], index: 3, kind: output, shape index: {1}]
  %s4 = inlined_call_operand.hbm [shape: f32[2,1,128], index: 4, kind: output, shape index: {2}]
  %s5 = inlined_call_operand.hbm [shape: f32[2,1,128], index: 5, kind: output, shape index: {3}]
  %6 = xla_tuple %s2, %s3, %s4, %s5
  %s7 = sld [smem:[#allocation0]]
  $region73: #{tpu_custom_call.1} parent=0
    _
  %s9 = ssub.s32 1, %s7
  %s10 = scalar_select 0, %s9, %s7
  $region1: #{tpu_custom_call.1} parent=0
    #allocation2 [shape = 'u8[8192]{0}', space=vmem, size = 0x2000, scoped, tag = 'input window, operand 0']
    #allocation3 [shape = 's32[2]{0}', space=sflag, size = 0x8, scoped, tag = 'scoped memory for tpu_custom_call.1']
    #allocation4 [shape = 's32[2]{0}', space=sflag, size = 0x8, scoped, tag = 'scoped memory for tpu_custom_call.1']
    #allocation5 [shape = 'u8[32768]{0}', space=vmem, size = 0x8000, scoped, tag = 'input window, operand 1, single buffered']
    #allocation6 [shape = 's32[1]{0}', space=sflag, size = 0x4, scoped, tag = 'scoped memory for tpu_custom_call.1']
    #allocation7 [shape = 'u8[8192]{0}', space=vmem, size = 0x2000, scoped, tag = 'output window, operand 0']
    #allocation8 [shape = 'u8[8192]{0}', space=vmem, size = 0x2000, scoped, tag = 'output window, operand 1']
    #allocation9 [shape = 's32[2]{0}', space=sflag, size = 0x8, scoped, tag = 'scoped memory for tpu_custom_call.1']
    #allocation10 [shape = 'u8[1024]{0}', space=vmem, size = 0x400, scoped, tag = 'output window, operand 2']
    #allocation11 [shape = 'u8[1024]{0}', space=vmem, size = 0x400, scoped, tag = 'output window, operand 3']
    #allocation12 [shape = 's32[2]{0}', space=sflag, size = 0x8, scoped, tag = 'scoped memory for tpu_custom_call.1']
    %11 = vsyncpa [#allocation3], 0
    %s12 = scalar_lea.sflag [#allocation3], 1
    %13 = vsyncpa %s12, 0
    %14 = vsyncpa [#allocation6], 0
    %15 = vsyncpa [#allocation4], 0
    %s16 = scalar_lea.sflag [#allocation4], 1
    %17 = vsyncpa %s16, 0
    %18 = vsyncpa [#allocation9], 0
    %s19 = scalar_lea.sflag [#allocation9], 1
    %20 = vsyncpa %s19, 0
    %21 = vsyncpa [#allocation12], 0
    %s22 = scalar_lea.sflag [#allocation12], 1
    %23 = vsyncpa %s22, 0
    loop: start=0, step=1, limit=4
    $region2: #{tpu_custom_call.1} parent=1 // loop_pre_header
      _
    $region3: #{tpu_custom_call.1} parent=1 // loop_header
      %s25 = sphi 0, %s29
      %p26 = scmp.ge.s32.totalorder %s25, 4
      %s35 = sphi 0, %s37
      %s38 = sphi 0, %s35
      %s39 = sphi 0, %s38
      %s55 = sphi 0, %s39
      %s59 = sphi 0, %s59
      %s61 = sphi 0, %s59
      %s62 = sphi 0, %s61
      %s76 = sphi 0, %s62
      %s82 = sphi 0, %s84
      %s85 = sphi 0, %s82
      %s86 = sphi 0, %s85
      %s102 = sphi 0, %s86
      %s108 = sphi 0, %s110
      %s111 = sphi 0, %s108
      %s112 = sphi 0, %s111
      %s128 = sphi 0, %s112
      %s134 = sphi 0, %s136
      %s137 = sphi 0, %s134
      %s138 = sphi 0, %s137
      %s154 = sphi 0, %s138
      %s160 = sphi 0, %s162
      %s163 = sphi 0, %s160
      %s164 = sphi 0, %s163
      %s180 = sphi 0, %s164
    $region4: #{tpu_custom_call.1} parent=1 // loop_header_branch
      %28 = sbr.rel (%p26) target = $region8
    $region5: #{tpu_custom_call.1} parent=1 // loop_body
      %s30 = ssub.s32 %s25, 1
      %s31 = ssub.s32 %s25, 2
      %s32 = sadd.s32 %s25, 1
      %s33 = ssub.s32 %s25, %s32
      %p34 = scmp.eq.s32.totalorder %s33, 0
      %s36 = sadd.s32 %s35, 1
      %s37 = scalar_select %p34, %s35, %s36
      %p40 = pneg %p34
      %p41 = scmp.eq.s32.totalorder %s25, 1
      %p42 = por %p40, %p41
      %p43 = scmp.ne.s32.totalorder %s35, %s38
      %p44 = scmp.eq.s32.totalorder %s25, 0
      %p45 = por %p43, %p44
      %p46 = scmp.ne.s32.totalorder %s35, %s38
      %p47 = scmp.eq.s32.totalorder %s30, 1
      %p48 = por %p46, %p47
      %p49 = scmp.ne.s32.totalorder %s38, %s39
      %p50 = scmp.eq.s32.totalorder %s30, 0
      %p51 = por %p49, %p50
      %p52 = scmp.ne.s32.totalorder %s38, %s39
      %p53 = scmp.eq.s32.totalorder %s31, 1
      %p54 = por %p52, %p53
      %p56 = scmp.ne.s32.totalorder %s39, %s55
      %p57 = scmp.eq.s32.totalorder %s31, 0
      %p58 = por %p56, %p57
      %s60 = sadd.s32 %s59, 1
      %p63 = scmp.eq.s32.totalorder %s25, 1
      %p64 = scmp.ne.s32.totalorder %s59, %s61
      %p65 = scmp.eq.s32.totalorder %s25, 0
      %p66 = por %p64, %p65
      %p67 = scmp.ne.s32.totalorder %s59, %s61
      %p68 = scmp.eq.s32.totalorder %s30, 1
      %p69 = por %p67, %p68
      %p70 = scmp.ne.s32.totalorder %s61, %s62
      %p71 = scmp.eq.s32.totalorder %s30, 0
      %p72 = por %p70, %p71
      %p73 = scmp.ne.s32.totalorder %s61, %s62
      %p74 = scmp.eq.s32.totalorder %s31, 1
      %p75 = por %p73, %p74
      %p77 = scmp.ne.s32.totalorder %s62, %s76
      %p78 = scmp.eq.s32.totalorder %s31, 0
      %p79 = por %p77, %p78
      %s80 = ssub.s32 %s25, %s32
      %p81 = scmp.eq.s32.totalorder %s80, 0
      %s83 = sadd.s32 %s82, 1
      %s84 = scalar_select %p81, %s82, %s83
      %p87 = pneg %p81
      %p88 = scmp.eq.s32.totalorder %s25, 1
      %p89 = por %p87, %p88
      %p90 = scmp.ne.s32.totalorder %s82, %s85
      %p91 = scmp.eq.s32.totalorder %s25, 0
      %p92 = por %p90, %p91
      %p93 = scmp.ne.s32.totalorder %s82, %s85
      %p94 = scmp.eq.s32.totalorder %s30, 1
      %p95 = por %p93, %p94
      %p96 = scmp.ne.s32.totalorder %s85, %s86
      %p97 = scmp.eq.s32.totalorder %s30, 0
      %p98 = por %p96, %p97
      %p99 = scmp.ne.s32.totalorder %s85, %s86
      %p100 = scmp.eq.s32.totalorder %s31, 1
      %p101 = por %p99, %p100
      %p103 = scmp.ne.s32.totalorder %s86, %s102
      %p104 = scmp.eq.s32.totalorder %s31, 0
      %p105 = por %p103, %p104
      %s106 = ssub.s32 %s25, %s32
      %p107 = scmp.eq.s32.totalorder %s106, 0
      %s109 = sadd.s32 %s108, 1
      %s110 = scalar_select %p107, %s108, %s109
      %p113 = pneg %p107
      %p114 = scmp.eq.s32.totalorder %s25, 1
      %p115 = por %p113, %p114
      %p116 = scmp.ne.s32.totalorder %s108, %s111
      %p117 = scmp.eq.s32.totalorder %s25, 0
      %p118 = por %p116, %p117
      %p119 = scmp.ne.s32.totalorder %s108, %s111
      %p120 = scmp.eq.s32.totalorder %s30, 1
      %p121 = por %p119, %p120
      %p122 = scmp.ne.s32.totalorder %s111, %s112
      %p123 = scmp.eq.s32.totalorder %s30, 0
      %p124 = por %p122, %p123
      %p125 = scmp.ne.s32.totalorder %s111, %s112
      %p126 = scmp.eq.s32.totalorder %s31, 1
      %p127 = por %p125, %p126
      %p129 = scmp.ne.s32.totalorder %s112, %s128
      %p130 = scmp.eq.s32.totalorder %s31, 0
      %p131 = por %p129, %p130
      %s132 = ssub.s32 %s25, %s32
      %p133 = scmp.eq.s32.totalorder %s132, 0
      %s135 = sadd.s32 %s134, 1
      %s136 = scalar_select %p133, %s134, %s135
      %p139 = pneg %p133
      %p140 = scmp.eq.s32.totalorder %s25, 1
      %p141 = por %p139, %p140
      %p142 = scmp.ne.s32.totalorder %s134, %s137
      %p143 = scmp.eq.s32.totalorder %s25, 0
      %p144 = por %p142, %p143
      %p145 = scmp.ne.s32.totalorder %s134, %s137
      %p146 = scmp.eq.s32.totalorder %s30, 1
      %p147 = por %p145, %p146
      %p148 = scmp.ne.s32.totalorder %s137, %s138
      %p149 = scmp.eq.s32.totalorder %s30, 0
      %p150 = por %p148, %p149
      %p151 = scmp.ne.s32.totalorder %s137, %s138
      %p152 = scmp.eq.s32.totalorder %s31, 1
      %p153 = por %p151, %p152
      %p155 = scmp.ne.s32.totalorder %s138, %s154
      %p156 = scmp.eq.s32.totalorder %s31, 0
      %p157 = por %p155, %p156
      %s158 = ssub.s32 %s25, %s32
      %p159 = scmp.eq.s32.totalorder %s158, 0
      %s161 = sadd.s32 %s160, 1
      %s162 = scalar_select %p159, %s160, %s161
      %p165 = pneg %p159
      %p166 = scmp.eq.s32.totalorder %s25, 1
      %p167 = por %p165, %p166
      %p168 = scmp.ne.s32.totalorder %s160, %s163
      %p169 = scmp.eq.s32.totalorder %s25, 0
      %p170 = por %p168, %p169
      %p171 = scmp.ne.s32.totalorder %s160, %s163
      %p172 = scmp.eq.s32.totalorder %s30, 1
      %p173 = por %p171, %p172
      %p174 = scmp.ne.s32.totalorder %s163, %s164
      %p175 = scmp.eq.s32.totalorder %s30, 0
      %p176 = por %p174, %p175
      %p177 = scmp.ne.s32.totalorder %s163, %s164
      %p178 = scmp.eq.s32.totalorder %s31, 1
      %p179 = por %p177, %p178
      %p181 = scmp.ne.s32.totalorder %s164, %s180
      %p182 = scmp.eq.s32.totalorder %s31, 0
      %p183 = por %p181, %p182
      %p184 = scmp.le.s32.totalorder 1, %s25
      %p185 = scmp.lt.s32.totalorder %s25, 3
      %p186 = pnand %p184, %p185
      %p187 = pneg %p186
      // Predicated region
      $region9: #{tpu_custom_call.1} parent=5 // pred_check
        _
      $region10: #{tpu_custom_call.1} parent=5 // pred_check_branch
        %189 = sbr.rel (%p186) target = $region12
      $region11: #{tpu_custom_call.1} parent=5 // pred_region
        %s190 = ssub.s32 %s25, 1
        // Predicated region
        $region13: #{tpu_custom_call.1} parent=11 // pred_check
          %p191 = pneg %p72
        $region14: #{tpu_custom_call.1} parent=11 // pred_check_branch
          %193 = sbr.rel (%p191) target = $region16
        $region15: #{tpu_custom_call.1} parent=11 // pred_region
          %s195 = ssub.s32 1024, 1024
          %196 = vsyncadd [#allocation6], %s195
          %s197 = sshll.u32 [#allocation5], 4
          %s198 = int_to_ptr.vmem [resolvable:$true] %s197
          %203 = dma.hbm_to_vmem [thread:$0]  %s1, 1024, %s198, [#allocation6], 128, 128, 8
        $region16: #{tpu_custom_call.1} parent=11 // pred_fallthru
          _
      $region12: #{tpu_custom_call.1} parent=5 // pred_fallthru
        _
      %p204 = scmp.lt.s32.totalorder %s25, 2
      // Predicated region
      $region17: #{tpu_custom_call.1} parent=5 // pred_check
        %p205 = pneg %p204
      $region18: #{tpu_custom_call.1} parent=5 // pred_check_branch
        %207 = sbr.rel (%p205) target = $region20
      $region19: #{tpu_custom_call.1} parent=5 // pred_region
        // Predicated region
        $region21: #{tpu_custom_call.1} parent=19 // pred_check
          %p208 = pneg %p45
        $region22: #{tpu_custom_call.1} parent=19 // pred_check_branch
          %210 = sbr.rel (%p208) target = $region24
        $region23: #{tpu_custom_call.1} parent=19 // pred_region
          %s211 = sand.u32 %s35, 1
          %s212 = scalar_lea.sflag [#allocation3], %s211
          %s213 = sand.u32 %s35, 1
          %s214 = smul.addr %s213, 8
          %s215 = scalar_lea.vmem [#allocation2], %s214
          %s216 = smul.u32 2, %s25
          %s218 = ssub.s32 128, 128
          %219 = vsyncadd %s212, %s218
          %s220 = smul.addr %s216, 64
          %s221 = scalar_lea.hbm %s0, %s220
          %s222 = sshll.u32 %s215, 4
          %s223 = int_to_ptr.vmem [resolvable:$true] %s222
          %228 = dma.hbm_to_vmem [thread:$0]  %s221, 128, %s223, %s212, 64, 64, 4
        $region24: #{tpu_custom_call.1} parent=19 // pred_fallthru
          _
      $region20: #{tpu_custom_call.1} parent=5 // pred_fallthru
        _
      %p229 = scmp.le.s32.totalorder 1, %s25
      %p230 = scmp.lt.s32.totalorder %s25, 3
      %p231 = pnand %p229, %p230
      %p232 = pneg %p231
      // Predicated region
      $region25: #{tpu_custom_call.1} parent=5 // pred_check
        _
      $region26: #{tpu_custom_call.1} parent=5 // pred_check_branch
        %234 = sbr.rel (%p231) target = $region28
      $region27: #{tpu_custom_call.1} parent=5 // pred_region
        %s235 = ssub.s32 %s25, 1
        %s236 = sand.u32 %s38, 1
        %s237 = scalar_lea.sflag [#allocation3], %s236
        %s238 = sand.u32 %s38, 1
        %s239 = smul.addr %s238, 8
        %s240 = scalar_lea.vmem [#allocation2], %s239
        // Predicated region
        $region29: #{tpu_custom_call.1} parent=27 // pred_check
          %p241 = pneg %p51
        $region30: #{tpu_custom_call.1} parent=27 // pred_check_branch
          %243 = sbr.rel (%p241) target = $region32
        $region31: #{tpu_custom_call.1} parent=27 // pred_region
          %244 = dma.done %s237, 128
        $region32: #{tpu_custom_call.1} parent=27 // pred_fallthru
          _
        // Predicated region
        $region33: #{tpu_custom_call.1} parent=27 // pred_check
          %p245 = pneg %p72
        $region34: #{tpu_custom_call.1} parent=27 // pred_check_branch
          %247 = sbr.rel (%p245) target = $region36
        $region35: #{tpu_custom_call.1} parent=27 // pred_region
          %248 = dma.done [#allocation6], 1024
        $region36: #{tpu_custom_call.1} parent=27 // pred_fallthru
          _
        %s249 = sand.u32 %s38, 1
        %s250 = scalar_lea.sflag [#allocation3], %s249
        %s251 = sand.u32 %s38, 1
        %s252 = smul.addr %s251, 8
        %s253 = scalar_lea.vmem [#allocation2], %s252
        %p254 = pneg %p51
        %p255 = pneg %p48
        %p256 = pneg %p72
        %p257 = pneg %p69
        %p258 = pneg %p98
        %p259 = pneg %p95
        %s260 = sand.u32 %s85, 1
        %s261 = scalar_lea.sflag [#allocation4], %s260
        %s262 = sand.u32 %s85, 1
        %s263 = smul.addr %s262, 8
        %s264 = scalar_lea.vmem [#allocation7], %s263
        %p265 = pneg %p124
        %p266 = pneg %p121
        %s267 = sand.u32 %s30, 1
        %s268 = scalar_lea.sflag [#allocation9], %s267
        %s269 = sand.u32 %s111, 1
        %s270 = smul.addr %s269, 8
        %s271 = scalar_lea.vmem [#allocation8], %s270
        %p272 = pneg %p150
        %p273 = pneg %p147
        %s274 = sand.u32 %s30, 1
        %s275 = scalar_lea.sflag [#allocation9], %s274
        %s276 = sand.u32 %s137, 1
        %s277 = scalar_lea.vmem [#allocation10], %s276
        %p278 = pneg %p176
        %p279 = pneg %p173
        %s280 = sand.u32 %s163, 1
        %s281 = scalar_lea.sflag [#allocation12], %s280
        %s282 = sand.u32 %s163, 1
        %s283 = scalar_lea.vmem [#allocation11], %s282
        %s284 = smul.u32 2, %s30
        %s285 = smul.u32 2, %s30
        %s286 = smul.u32 2, %s30
        %v288 = vld [vmem:[%s240] sm:$0xf]
        %v289 = vld [vmem:[%s240 + $0x4] sm:$0xf]
        %v290 = vld [vmem:[#allocation5] sm:$0xff]
        %v291 = vld [vmem:[#allocation5 + $0x8] sm:$0xff]
        %v292 = vld [vmem:[#allocation5 + $0x10] sm:$0xff]
        %v293 = vld [vmem:[#allocation5 + $0x18] sm:$0xff]
        %v294 = vld [vmem:[#allocation5 + $0x20] sm:$0xff]
        %v295 = vld [vmem:[#allocation5 + $0x28] sm:$0xff]
        %v296 = vld [vmem:[#allocation5 + $0x30] sm:$0xff]
        %v297 = vld [vmem:[#allocation5 + $0x38] sm:$0xff]
        %v300 = vunpack.c.l.b16 %v288
        %v301 = vunpack.c.l.b16 %v289
        %v302 = vpack.c.b16 %v301, %v300
        %v311 = vunpack.c.l.b16 %v290
        %v312 = vunpack.c.h.b16 %v290
        %v313 = vunpack.c.l.b16 %v291
        %v314 = vunpack.c.h.b16 %v291
        %v315 = vunpack.c.l.b16 %v292
        %v316 = vunpack.c.h.b16 %v292
        %v317 = vunpack.c.l.b16 %v293
        %v318 = vunpack.c.h.b16 %v293
        %v319 = vunpack.c.l.b16 %v294
        %v320 = vunpack.c.h.b16 %v294
        %v321 = vunpack.c.l.b16 %v295
        %v322 = vunpack.c.h.b16 %v295
        %v323 = vunpack.c.l.b16 %v296
        %v324 = vunpack.c.h.b16 %v296
        %v325 = vunpack.c.l.b16 %v297
        %v326 = vunpack.c.h.b16 %v297
        %v327 = vpack.c.b16 %v313, %v311
        %v328 = vpack.c.b16 %v314, %v312
        %v329 = vpack.c.b16 %v317, %v315
        %v330 = vpack.c.b16 %v318, %v316
        %v331 = vpack.c.b16 %v321, %v319
        %v332 = vpack.c.b16 %v322, %v320
        %v333 = vpack.c.b16 %v325, %v323
        %v334 = vpack.c.b16 %v326, %v324
        %vm343 = vcmask 523264
        %v345 = vsel %vm343, %v302, 0
        %347 = vmatprep.subr.bf16.mxu0 %v328
        %348 = vmatpush1.bf16.msra.mxu0 %v327
        %349 = vmatprep.subr.bf16.mxu0 %v330
        %350 = vmatpush1.bf16.msra.mxu0 %v329
        %351 = vmatprep.subr.bf16.mxu0 %v332
        %352 = vmatpush1.bf16.msra.mxu0 %v331
        %353 = vmatprep.subr.bf16.mxu0 %v334
        %354 = vmatpush1.bf16.msra.mxu0 %v333
        %355 = vmatprep.subr.bf16.mxu0 0
        %356 = vmatpush1.bf16.msra.mxu0 0
        %357 = vmatprep.subr.bf16.mxu0 0
        %358 = vmatpush1.bf16.msra.mxu0 0
        %359 = vmatprep.subr.bf16.mxu0 0
        %360 = vmatpush1.bf16.msra.mxu0 0
        %361 = vmatprep.subr.bf16.mxu0 0
        %362 = vmatpush1.bf16.msra.mxu0 0
        %363 = vmatprep.subr.bf16.mxu0 0
        %364 = vmatpush1.bf16.msra.mxu0 0
        %365 = vmatprep.subr.bf16.mxu0 0
        %366 = vmatpush1.bf16.msra.mxu0 0
        %367 = vmatprep.subr.bf16.mxu0 0
        %368 = vmatpush1.bf16.msra.mxu0 0
        %369 = vmatprep.subr.bf16.mxu0 0
        %370 = vmatpush1.bf16.msra.mxu0 0
        %371 = vmatprep.subr.bf16.mxu0 0
        %372 = vmatpush1.bf16.msra.mxu0 0
        %373 = vmatprep.subr.bf16.mxu0 0
        %374 = vmatpush1.bf16.msra.mxu0 0
        %375 = vmatprep.subr.bf16.mxu0 0
        %376 = vmatpush1.bf16.msra.mxu0 0
        %377 = vmatprep.subr.bf16.mxu0 0
        %378 = vmatpush1.bf16.msra.mxu0 0
        %379 = vmatprep.mubr.bf16.mxu0 0
        %380 = vmatmul.mubr.bf16.gmra.mrb[0].mxu0 %v345
        %v381 = vpop.f32.mrb[0].mxu0
        %v382 = vadd.f32 0.0, %v381
        %v383 = vpop.f32.mrb[0].mxu0
        %v384 = vadd.f32 0.0, %v383
        %v385 = vpop.f32.mrb[0].mxu0
        %v386 = vadd.f32 0.0, %v385
        %v387 = vpop.f32.mrb[0].mxu0
        %v388 = vadd.f32 0.0, %v387
        %389 = vdwg.mxu0
        %v390 = vpack.c.bf16 %v386, %v382
        %v391 = vpack.c.bf16 %v388, %v384
        %v393 = vunpack.c.l.b16 %v390
        %v394 = vunpack.c.h.b16 %v390
        %v395 = vpack.c.b16 %v393, %v393
        %v396 = vpack.c.b16 %v394, %v394
        %399 = vst [vmem:[%s264] sm:$0xf] %v395
        %400 = vst [vmem:[%s264 + $0x4] sm:$0xf] %v396
        %v402 = vunpack.c.l.b16 %v391
        %v403 = vunpack.c.h.b16 %v391
        %v404 = vpack.c.b16 %v402, %v402
        %v405 = vpack.c.b16 %v403, %v403
        %408 = vst [vmem:[%s271] sm:$0xf] %v404
        %409 = vst [vmem:[%s271 + $0x4] sm:$0xf] %v405
        %v410 = vunpack.c.l.bf16 %v390
        %v411 = vunpack.c.h.bf16 %v390
        %v412 = vunpack.c.l.bf16 %v391
        %v413 = vunpack.c.h.bf16 %v391
        %v414 = vmul.f32 %v410, %v410
        %v415 = vmul.f32 %v411, %v411
        %v416 = vmul.f32 %v412, %v412
        %v417 = vmul.f32 %v413, %v413
        %v418 = vadd.f32 %v414, %v416
        %v419 = vadd.f32 %v415, %v417
        %v420 = vlaneseq
        %v421 = vshrl.u32 %v420, 7
        %v422 = vadd.s32 %v421, 8
        %s423 = smul.u32 %s30, 16
        %v424 = vstv %s423
        %v425 = vadd.s32 %v421, %v424
        %v426 = vadd.s32 %v422, %v424
        %vm427 = vcmp.ge.s32.totalorder %v425, 8
        %vm428 = vcmp.ge.s32.totalorder %v426, 8
        %vm429 = vcmp.lt.s32.totalorder %v425, 17
        %vm430 = vcmp.lt.s32.totalorder %v426, 17
        %vm431 = vmand %vm427, %vm429
        %vm432 = vmand %vm428, %vm430
        %v433 = vsel %vm431, %v418, -inf
        %v434 = vsel %vm432, %v419, -inf
        %v435 = vmax.f32 %v433, %v434
        %v436 = vrot.slane %v435, 4
        %v437 = vmax.f32 %v435, %v436
        %v438 = vrot.slane %v437, 2
        %v439 = vmax.f32 %v437, %v438
        %v440 = vrot.slane %v439, 1
        %v441 = vmax.f32 %v439, %v440
        %v442 = vsel %vm431, %v418, inf
        %v443 = vsel %vm432, %v419, inf
        %v444 = vmin.f32 %v442, %v443
        %v445 = vrot.slane %v444, 4
        %v446 = vmin.f32 %v444, %v445
        %v447 = vrot.slane %v446, 2
        %v448 = vmin.f32 %v446, %v447
        %v449 = vrot.slane %v448, 1
        %v450 = vmin.f32 %v448, %v449
        %451 = vst [vmem:[%s277] sm:$0x1] %v441
        %452 = vst [vmem:[%s283] sm:$0x1] %v450
        %s453 = sand.u32 %s85, 1
        %s454 = scalar_lea.sflag [#allocation4], %s453
        %s455 = sand.u32 %s85, 1
        %s456 = smul.addr %s455, 8
        %s457 = scalar_lea.vmem [#allocation7], %s456
        %s458 = sand.u32 %s30, 1
        %s459 = scalar_lea.sflag [#allocation9], %s458
        %s460 = sand.u32 %s111, 1
        %s461 = smul.addr %s460, 8
        %s462 = scalar_lea.vmem [#allocation8], %s461
        %s463 = sand.u32 %s30, 1
        %s464 = scalar_lea.sflag [#allocation9], %s463
        %s465 = sand.u32 %s137, 1
        %s466 = scalar_lea.vmem [#allocation10], %s465
        %s467 = sand.u32 %s163, 1
        %s468 = scalar_lea.sflag [#allocation12], %s467
        %s469 = sand.u32 %s163, 1
        %s470 = scalar_lea.vmem [#allocation11], %s469
        // Predicated region
        $region37: #{tpu_custom_call.1} parent=27 // pred_check
          %p471 = pneg %p95
        $region38: #{tpu_custom_call.1} parent=27 // pred_check_branch
          %473 = sbr.rel (%p471) target = $region40
        $region39: #{tpu_custom_call.1} parent=27 // pred_region
          %s474 = smul.u32 2, %s30
          %s476 = ssub.s32 128, 128
          %477 = vsyncadd %s454, %s476
          %s478 = smul.addr %s474, 64
          %s479 = scalar_lea.hbm %s2, %s478
          %s480 = sshll.u32 %s457, 4
          %s481 = int_to_ptr.vmem [resolvable:$true] %s480
          %486 = dma.vmem_to_hbm [thread:$0]  %s481, 128, %s479, %s454, 64, 64, 4
        $region40: #{tpu_custom_call.1} parent=27 // pred_fallthru
          _
        // Predicated region
        $region41: #{tpu_custom_call.1} parent=27 // pred_check
          %p487 = pneg %p121
        $region42: #{tpu_custom_call.1} parent=27 // pred_check_branch
          %489 = sbr.rel (%p487) target = $region44
        $region43: #{tpu_custom_call.1} parent=27 // pred_region
          %s490 = smul.u32 2, %s30
          %s492 = ssub.s32 128, 128
          %493 = vsyncadd %s459, %s492
          %s494 = smul.addr %s490, 64
          %s495 = scalar_lea.hbm %s3, %s494
          %s496 = sshll.u32 %s462, 4
          %s497 = int_to_ptr.vmem [resolvable:$true] %s496
          %502 = dma.vmem_to_hbm [thread:$0]  %s497, 128, %s495, %s459, 64, 64, 4
        $region44: #{tpu_custom_call.1} parent=27 // pred_fallthru
          _
        // Predicated region
        $region45: #{tpu_custom_call.1} parent=27 // pred_check
          %p503 = pneg %p147
        $region46: #{tpu_custom_call.1} parent=27 // pred_check_branch
          %505 = sbr.rel (%p503) target = $region48
        $region47: #{tpu_custom_call.1} parent=27 // pred_region
          %s507 = ssub.s32 16, 16
          %508 = vsyncadd %s464, %s507
          %s509 = smul.addr %s30, 16
          %s510 = scalar_lea.hbm %s4, %s509
          %s512 = sshll.u32 %s466, 4
          %s513 = int_to_ptr.vmem [resolvable:$true] %s512
          %515 = dma.vmem_to_hbm [thread:$0]  %s513, 16, %s510, %s464
        $region48: #{tpu_custom_call.1} parent=27 // pred_fallthru
          _
        // Predicated region
        $region49: #{tpu_custom_call.1} parent=27 // pred_check
          %p516 = pneg %p173
        $region50: #{tpu_custom_call.1} parent=27 // pred_check_branch
          %518 = sbr.rel (%p516) target = $region52
        $region51: #{tpu_custom_call.1} parent=27 // pred_region
          %s520 = ssub.s32 16, 16
          %521 = vsyncadd %s468, %s520
          %s522 = smul.addr %s30, 16
          %s523 = scalar_lea.hbm %s5, %s522
          %s525 = sshll.u32 %s470, 4
          %s526 = int_to_ptr.vmem [resolvable:$true] %s525
          %528 = dma.vmem_to_hbm [thread:$0]  %s526, 16, %s523, %s468
        $region52: #{tpu_custom_call.1} parent=27 // pred_fallthru
          _
      $region28: #{tpu_custom_call.1} parent=5 // pred_fallthru
        _
      %p529 = scmp.le.s32.totalorder 2, %s25
      // Predicated region
      $region53: #{tpu_custom_call.1} parent=5 // pred_check
        %p530 = pneg %p529
      $region54: #{tpu_custom_call.1} parent=5 // pred_check_branch
        %532 = sbr.rel (%p530) target = $region56
      $region55: #{tpu_custom_call.1} parent=5 // pred_region
        %s533 = ssub.s32 %s25, 2
        // Predicated region
        $region57: #{tpu_custom_call.1} parent=55 // pred_check
          %p534 = pneg %p101
        $region58: #{tpu_custom_call.1} parent=55 // pred_check_branch
          %536 = sbr.rel (%p534) target = $region60
        $region59: #{tpu_custom_call.1} parent=55 // pred_region
          %s537 = sand.u32 %s86, 1
          %s538 = scalar_lea.sflag [#allocation4], %s537
          %s539 = sand.u32 %s86, 1
          %s540 = smul.addr %s539, 8
          %s541 = scalar_lea.vmem [#allocation7], %s540
          %542 = dma.done %s538, 128
        $region60: #{tpu_custom_call.1} parent=55 // pred_fallthru
          _
        // Predicated region
        $region61: #{tpu_custom_call.1} parent=55 // pred_check
          %p543 = pneg %p127
        $region62: #{tpu_custom_call.1} parent=55 // pred_check_branch
          %545 = sbr.rel (%p543) target = $region64
        $region63: #{tpu_custom_call.1} parent=55 // pred_region
          %s546 = sand.u32 %s31, 1
          %s547 = scalar_lea.sflag [#allocation9], %s546
          %s548 = sand.u32 %s112, 1
          %s549 = smul.addr %s548, 8
          %s550 = scalar_lea.vmem [#allocation8], %s549
          %551 = dma.done %s547, 128
        $region64: #{tpu_custom_call.1} parent=55 // pred_fallthru
          _
        // Predicated region
        $region65: #{tpu_custom_call.1} parent=55 // pred_check
          %p552 = pneg %p153
        $region66: #{tpu_custom_call.1} parent=55 // pred_check_branch
          %554 = sbr.rel (%p552) target = $region68
        $region67: #{tpu_custom_call.1} parent=55 // pred_region
          %s555 = sand.u32 %s31, 1
          %s556 = scalar_lea.sflag [#allocation9], %s555
          %s557 = sand.u32 %s138, 1
          %s558 = scalar_lea.vmem [#allocation10], %s557
          %559 = dma.done %s556, 16
        $region68: #{tpu_custom_call.1} parent=55 // pred_fallthru
          _
        // Predicated region
        $region69: #{tpu_custom_call.1} parent=55 // pred_check
          %p560 = pneg %p179
        $region70: #{tpu_custom_call.1} parent=55 // pred_check_branch
          %562 = sbr.rel (%p560) target = $region72
        $region71: #{tpu_custom_call.1} parent=55 // pred_region
          %s563 = sand.u32 %s164, 1
          %s564 = scalar_lea.sflag [#allocation12], %s563
          %s565 = sand.u32 %s164, 1
          %s566 = scalar_lea.vmem [#allocation11], %s565
          %567 = dma.done %s564, 16
        $region72: #{tpu_custom_call.1} parent=55 // pred_fallthru
          _
      $region56: #{tpu_custom_call.1} parent=5 // pred_fallthru
        _
    $region6: #{tpu_custom_call.1} parent=1 // loop_footer
      %s29 = sadd.s32 1, %s25
    $region7: #{tpu_custom_call.1} parent=1 // loop_footer_branch
      %24 = sbr.rel target = $region3
    $region8: #{tpu_custom_call.1} parent=1 // loop_exit
      _
    %568 = vsyncpa [#allocation3], 1
    %s569 = scalar_lea.sflag [#allocation3], 1
    %570 = vsyncpa %s569, 1
    %571 = vsyncpa [#allocation6], 1
    %572 = vsyncpa [#allocation4], 1
    %s573 = scalar_lea.sflag [#allocation4], 1
    %574 = vsyncpa %s573, 1
    %575 = vsyncpa [#allocation9], 1
    %s576 = scalar_lea.sflag [#allocation9], 1
    %577 = vsyncpa %s576, 1
    %578 = vsyncpa [#allocation12], 1
    %s579 = scalar_lea.sflag [#allocation12], 1
    %580 = vsyncpa %s579, 1

</llo_original>
